<compile_context>
chip_gen: v6e
topology: v6e:2x2x1
jax: 0.10.0
libtpu: 0.0.40
codegen_flags: <defaults>
</compile_context>

<pallas_src>
import functools

import jax
import jax.numpy as jnp
from jax.experimental import pallas as pl
from jax.experimental.pallas import tpu as pltpu

_LANES = 384          # 128 original rows * 3 interleaved split values per tile row
_OUT_LANES = 128      # one dense vreg-width slab per split per tile row
_MAX_ROW_TILE = 1024  # rows of the (Mr, 384) view per grid step (~1.5 MiB real data)


def _row_tile(mr: int) -> int:
    if mr <= 8:
        return mr                      # single block == full array extent
    half = (mr + 1) // 2               # >= 2 grid steps so both v7x TCs get work
    half = ((half + 7) // 8) * 8       # sublane multiple for the (8, 128) rule
    return min(half, _MAX_ROW_TILE)


def _strided_deinterleave_kernel(x_ref, o0_ref, o1_ref, o2_ref):
    # x_ref: (TR, 384) with lanes interleaved as (s0, s1, s2) triplets.
    # o*_ref: (TR, 128) dense slab for each split.  Pure data movement.
    o0_ref[...] = x_ref[:, pl.ds(0, _OUT_LANES, stride=3)]
    o1_ref[...] = x_ref[:, pl.ds(1, _OUT_LANES, stride=3)]
    o2_ref[...] = x_ref[:, pl.ds(2, _OUT_LANES, stride=3)]


def _matmul_deinterleave_kernel(x_ref, o0_ref, o1_ref, o2_ref):
    # Guaranteed-lowerable fallback: de-interleave via 0/1 selection matrices on
    # the MXU (exact: each output element is x * 1.0 plus zeros).
    x = x_ref[...]
    j = jax.lax.broadcasted_iota(jnp.int32, (_LANES, _OUT_LANES), 0)
    l = jax.lax.broadcasted_iota(jnp.int32, (_LANES, _OUT_LANES), 1)
    for k, o_ref in enumerate((o0_ref, o1_ref, o2_ref)):
        sel = (j == 3 * l + k).astype(x.dtype)
        o_ref[...] = jnp.dot(
            x, sel, preferred_element_type=jnp.float32
        ).astype(o_ref.dtype)


def _make_split_fn(kernel_body, mr: int, dtype) -> callable:
    trr = _row_tile(mr)
    itemsize = jnp.dtype(dtype).itemsize
    return pl.pallas_call(
        kernel_body,
        out_shape=tuple(
            jax.ShapeDtypeStruct((mr, _OUT_LANES), dtype) for _ in range(3)
        ),
        grid=(pl.cdiv(mr, trr),),
        in_specs=[pl.BlockSpec((trr, _LANES), lambda i: (i, 0))],
        out_specs=tuple(
            pl.BlockSpec((trr, _OUT_LANES), lambda i: (i, 0)) for _ in range(3)
        ),
        compiler_params=pltpu.CompilerParams(dimension_semantics=("parallel",)),
        cost_estimate=pl.CostEstimate(
            flops=0,
            transcendentals=0,
            bytes_accessed=2 * mr * _LANES * itemsize,  # one read + one write pass
        ),
    )


@functools.lru_cache(maxsize=None)
def _split_callable(mr: int, dtype_name: str):
    """One-time cached lowering probe: prefer the strided-lane kernel, fall back
    to the selection-matmul kernel if Mosaic rejects lane-strided loads."""
    dtype = jnp.dtype(dtype_name)
    primary = _make_split_fn(_strided_deinterleave_kernel, mr, dtype)
    try:
        jax.jit(primary).lower(jax.ShapeDtypeStruct((mr, _LANES), dtype)).compile()
        return primary
    except Exception:
        return _make_split_fn(_matmul_deinterleave_kernel, mr, dtype)


def model2_forward(v1):
    """Returns (concatenated_tensor, (split0, split1, split2)) like Model2."""
    N, C, H, W = v1.shape
    assert W == 3, "torch.split(v1, [1, 1, 1], dim=3) requires W == 3"
    M = N * C * H

    # cat(split(v1, dim=3), dim=3) is the identity: return the input, skip the
    # redundant HBM write entirely.
    concatenated = v1

    if M % 128 != 0:
        # Ragged row count: the lane-dense (M/128, 384) view is impossible, and
        # plain strided slices already run at HBM roofline for this tiny case.
        splits = tuple(
            jax.lax.slice_in_dim(v1, k, k + 1, axis=3) for k in range(3)
        )
        return concatenated, splits

    mr = M // 128
    x3 = v1.reshape(mr, _LANES)  # contiguous view: lane-dense input for the DMA
    fn = _split_callable(mr, jnp.dtype(v1.dtype).name)
    s0, s1, s2 = fn(x3)
    splits = tuple(s.reshape(N, C, H, 1) for s in (s0, s1, s2))
    return concatenated, splits


if __name__ == "__main__":
    key = jax.random.PRNGKey(0)

    # Small NCHW input consistent with split sizes [1, 1, 1] along dim=3.
    x = jax.random.normal(key, (2, 4, 16, 3), dtype=jnp.float32)

    cat, splits = model2_forward(x)
    cat = jax.block_until_ready(cat)
    splits = tuple(jax.block_until_ready(s) for s in splits)

    # Reference check (pure JAX) for the PyTorch semantics.
    ref_splits = (x[..., 0:1], x[..., 1:2], x[..., 2:3])
    ref_cat = jnp.concatenate(ref_splits, axis=3)
    assert cat.shape == (2, 4, 16, 3)
    assert all(s.shape == (2, 4, 16, 1) for s in splits)
    assert jnp.array_equal(cat, ref_cat)
    assert all(jnp.array_equal(a, b) for a, b in zip(splits, ref_splits))

    print("KERNEL_OK")
</pallas_src>

<mosaic_0001>
module attributes {stable_mosaic.version = 11 : i64} {
  func.func @_matmul_deinterleave_kernel(%arg0: i32, %arg1: memref<1x384xf32, #tpu.memory_space<vmem>>, %arg2: memref<1x128xf32, #tpu.memory_space<vmem>>, %arg3: memref<1x128xf32, #tpu.memory_space<vmem>>, %arg4: memref<1x128xf32, #tpu.memory_space<vmem>>) attributes {dimension_semantics = [#tpu.dimension_semantics<parallel>], iteration_bounds = array<i64: 1>, scalar_prefetch = 0 : i64, scratch_operands = 0 : i64, tpu.core_type = #tpu.core_type<tc>, window_params = [{transform_indices = @transform_0, window_bounds = array<i64: 1, 384>}, {transform_indices = @transform_1, window_bounds = array<i64: 1, 128>}, {transform_indices = @transform_2, window_bounds = array<i64: 1, 128>}, {transform_indices = @transform_3, window_bounds = array<i64: 1, 128>}]} {
    %c0 = arith.constant 0 : index
    %c0_0 = arith.constant 0 : index
    %0 = vector.load %arg1[%c0, %c0_0] : memref<1x384xf32, #tpu.memory_space<vmem>>, vector<1x384xf32>
    %1 = tpu.iota {dimensions = array<i32: 0>} : vector<384x128xi32>
    %2 = tpu.iota {dimensions = array<i32: 1>} : vector<384x128xi32>
    %c3_i32 = arith.constant 3 : i32
    %3 = vector.broadcast %c3_i32 : i32 to vector<384x128xi32>
    %4 = arith.muli %3, %2 : vector<384x128xi32>
    %c0_i32 = arith.constant 0 : i32
    %5 = vector.broadcast %c0_i32 : i32 to vector<384x128xi32>
    %6 = arith.addi %4, %5 : vector<384x128xi32>
    %7 = arith.cmpi eq, %1, %6 : vector<384x128xi32>
    %8 = arith.extui %7 : vector<384x128xi1> to vector<384x128xi32>
    %9 = arith.sitofp %8 : vector<384x128xi32> to vector<384x128xf32>
    %cst = arith.constant dense<0.000000e+00> : vector<1x128xf32>
    %10 = tpu.matmul %0, %9, %cst {dimension_numbers = #tpu.dot_dimension_numbers<[1], [0], [0], [1], [0, 0, 1, 1], [], []>} : vector<1x384xf32>, vector<384x128xf32>, vector<1x128xf32> -> vector<1x128xf32>
    %c0_1 = arith.constant 0 : index
    %c0_2 = arith.constant 0 : index
    %11 = vector.load %arg2[%c0_1, %c0_2] : memref<1x128xf32, #tpu.memory_space<vmem>>, vector<1x128xf32>
    tpu.vector_store %arg2[%c0_1, %c0_2], %10 {strides = array<i32>} : memref<1x128xf32, #tpu.memory_space<vmem>>, vector<1x128xf32>,
    %c3_i32_3 = arith.constant 3 : i32
    %12 = vector.broadcast %c3_i32_3 : i32 to vector<384x128xi32>
    %13 = arith.muli %12, %2 : vector<384x128xi32>
    %c1_i32 = arith.constant 1 : i32
    %14 = vector.broadcast %c1_i32 : i32 to vector<384x128xi32>
    %15 = arith.addi %13, %14 : vector<384x128xi32>
    %16 = arith.cmpi eq, %1, %15 : vector<384x128xi32>
    %17 = arith.extui %16 : vector<384x128xi1> to vector<384x128xi32>
    %18 = arith.sitofp %17 : vector<384x128xi32> to vector<384x128xf32>
    %cst_4 = arith.constant dense<0.000000e+00> : vector<1x128xf32>
    %19 = tpu.matmul %0, %18, %cst_4 {dimension_numbers = #tpu.dot_dimension_numbers<[1], [0], [0], [1], [0, 0, 1, 1], [], []>} : vector<1x384xf32>, vector<384x128xf32>, vector<1x128xf32> -> vector<1x128xf32>
    %c0_5 = arith.constant 0 : index
    %c0_6 = arith.constant 0 : index
    %20 = vector.load %arg3[%c0_5, %c0_6] : memref<1x128xf32, #tpu.memory_space<vmem>>, vector<1x128xf32>
    tpu.vector_store %arg3[%c0_5, %c0_6], %19 {strides = array<i32>} : memref<1x128xf32, #tpu.memory_space<vmem>>, vector<1x128xf32>,
    %c3_i32_7 = arith.constant 3 : i32
    %21 = vector.broadcast %c3_i32_7 : i32 to vector<384x128xi32>
    %22 = arith.muli %21, %2 : vector<384x128xi32>
    %c2_i32 = arith.constant 2 : i32
    %23 = vector.broadcast %c2_i32 : i32 to vector<384x128xi32>
    %24 = arith.addi %22, %23 : vector<384x128xi32>
    %25 = arith.cmpi eq, %1, %24 : vector<384x128xi32>
    %26 = arith.extui %25 : vector<384x128xi1> to vector<384x128xi32>
    %27 = arith.sitofp %26 : vector<384x128xi32> to vector<384x128xf32>
    %cst_8 = arith.constant dense<0.000000e+00> : vector<1x128xf32>
    %28 = tpu.matmul %0, %27, %cst_8 {dimension_numbers = #tpu.dot_dimension_numbers<[1], [0], [0], [1], [0, 0, 1, 1], [], []>} : vector<1x384xf32>, vector<384x128xf32>, vector<1x128xf32> -> vector<1x128xf32>
    %c0_9 = arith.constant 0 : index
    %c0_10 = arith.constant 0 : index
    %29 = vector.load %arg4[%c0_9, %c0_10] : memref<1x128xf32, #tpu.memory_space<vmem>>, vector<1x128xf32>
    tpu.vector_store %arg4[%c0_9, %c0_10], %28 {strides = array<i32>} : memref<1x128xf32, #tpu.memory_space<vmem>>, vector<1x128xf32>,
    return
  }
  func.func @transform_0(%arg0: i32) -> (i32, i32) {
    %c0_i32 = arith.constant 0 : i32
    %c0_i32_0 = arith.constant 0 : i32
    return %arg0, %c0_i32 : i32, i32
  }
  func.func @transform_1(%arg0: i32) -> (i32, i32) {
    %c0_i32 = arith.constant 0 : i32
    %c0_i32_0 = arith.constant 0 : i32
    return %arg0, %c0_i32 : i32, i32
  }
  func.func @transform_2(%arg0: i32) -> (i32, i32) {
    %c0_i32 = arith.constant 0 : i32
    %c0_i32_0 = arith.constant 0 : i32
    return %arg0, %c0_i32 : i32, i32
  }
  func.func @transform_3(%arg0: i32) -> (i32, i32) {
    %c0_i32 = arith.constant 0 : i32
    %c0_i32_0 = arith.constant 0 : i32
    return %arg0, %c0_i32 : i32, i32
  }
}

</mosaic_0001>

<llo_original>
// kernel: tpu_custom_call.1
$region0: #{tpu_custom_call.1}
  #allocation0 [shape = 'u32[]', space=smem, size = 0x4, offset = 0x4, fixed_abs, tag = 'smem constant byte address 0x4 - core index']
  #allocation1 [shape = 'u32[144,128]{1,0:T(1,128)}', space=vmem, size = 0x12000, scoped, tag = 'internal scratch']
  %s0 = inlined_call_operand.hbm [shape: f32[1,384], index: 0, kind: input, shape index: {}]
  %s1 = inlined_call_operand.hbm [shape: f32[1,128], index: 1, kind: output, shape index: {0}]
  %s2 = inlined_call_operand.hbm [shape: f32[1,128], index: 2, kind: output, shape index: {1}]
  %s3 = inlined_call_operand.hbm [shape: f32[1,128], index: 3, kind: output, shape index: {2}]
  %4 = xla_tuple %s1, %s2, %s3
  %s5 = sld [smem:[#allocation0]]
  $region34: #{tpu_custom_call.1} parent=0
    _
  %s7 = ssub.s32 1, %s5
  %s8 = scalar_select 0, %s7, %s5
  $region1: #{tpu_custom_call.1} parent=0
    #allocation2 [shape = 'u8[1536]{0}', space=vmem, size = 0x800, scoped, tag = 'input window, operand 0, single buffered']
    #allocation3 [shape = 's32[1]{0}', space=sflag, size = 0x4, scoped, tag = 'scoped memory for tpu_custom_call.1']
    #allocation4 [shape = 's32[1]{0}', space=sflag, size = 0x4, scoped, tag = 'scoped memory for tpu_custom_call.1']
    #allocation5 [shape = 'u8[512]{0}', space=vmem, size = 0x400, scoped, tag = 'output window, operand 0, single buffered']
    #allocation6 [shape = 'u8[512]{0}', space=vmem, size = 0x400, scoped, tag = 'output window, operand 1, single buffered']
    #allocation7 [shape = 's32[1]{0}', space=sflag, size = 0x4, scoped, tag = 'scoped memory for tpu_custom_call.1']
    #allocation8 [shape = 'u8[512]{0}', space=vmem, size = 0x400, scoped, tag = 'output window, operand 2, single buffered']
    %9 = vsyncpa [#allocation3], 0
    %10 = vsyncpa [#allocation4], 0
    %11 = vsyncpa [#allocation7], 0
    // Predicated region
    $region2: #{tpu_custom_call.1} parent=1 // pred_check
      _
    $region3: #{tpu_custom_call.1} parent=1 // pred_check_branch
      %13 = sbr.rel (0) target = $region5
    $region4: #{tpu_custom_call.1} parent=1 // pred_region
      %s15 = ssub.s32 48, 48
      %16 = vsyncadd [#allocation3], %s15
      %s18 = sshll.u32 [#allocation2], 4
      %s19 = int_to_ptr.vmem [resolvable:$true] %s18
      %21 = dma.hbm_to_vmem [thread:$0]  %s0, 48, %s19, [#allocation3]
    $region5: #{tpu_custom_call.1} parent=1 // pred_fallthru
      _
    // Predicated region
    $region6: #{tpu_custom_call.1} parent=1 // pred_check
      _
    $region7: #{tpu_custom_call.1} parent=1 // pred_check_branch
      %23 = sbr.rel (0) target = $region9
    $region8: #{tpu_custom_call.1} parent=1 // pred_region
      %24 = dma.done [#allocation3], 48
    $region9: #{tpu_custom_call.1} parent=1 // pred_fallthru
      _
    %v25 = vld [vmem:[#allocation2] sm:$0x7]
    %v26 = vlaneseq
    %v27 = vshrl.u32 %v26, 7
    %v28 = vadd.s32 %v27, 8
    %v29 = vadd.s32 %v27, 16
    %v30 = vadd.s32 %v27, 24
    %v31 = vadd.s32 %v27, 32
    %v32 = vadd.s32 %v27, 40
    %v33 = vadd.s32 %v27, 48
    %v34 = vadd.s32 %v27, 56
    %v35 = vadd.s32 %v27, 64
    %v36 = vadd.s32 %v27, 72
    %v37 = vadd.s32 %v27, 80
    %v38 = vadd.s32 %v27, 88
    %v39 = vadd.s32 %v27, 96
    %v40 = vadd.s32 %v27, 104
    %v41 = vadd.s32 %v27, 112
    %v42 = vadd.s32 %v27, 120
    %v43 = vadd.s32 %v27, 128
    %v44 = vadd.s32 %v27, 136
    %v45 = vadd.s32 %v27, 144
    %v46 = vadd.s32 %v27, 152
    %v47 = vadd.s32 %v27, 160
    %v48 = vadd.s32 %v27, 168
    %v49 = vadd.s32 %v27, 176
    %v50 = vadd.s32 %v27, 184
    %v51 = vadd.s32 %v27, 192
    %v52 = vadd.s32 %v27, 200
    %v53 = vadd.s32 %v27, 208
    %v54 = vadd.s32 %v27, 216
    %v55 = vadd.s32 %v27, 224
    %v56 = vadd.s32 %v27, 232
    %v57 = vadd.s32 %v27, 240
    %v58 = vadd.s32 %v27, 248
    %v59 = vadd.s32 %v27, 256
    %v60 = vadd.s32 %v27, 264
    %v61 = vadd.s32 %v27, 272
    %v62 = vadd.s32 %v27, 280
    %v63 = vadd.s32 %v27, 288
    %v64 = vadd.s32 %v27, 296
    %v65 = vadd.s32 %v27, 304
    %v66 = vadd.s32 %v27, 312
    %v67 = vadd.s32 %v27, 320
    %v68 = vadd.s32 %v27, 328
    %v69 = vadd.s32 %v27, 336
    %v70 = vadd.s32 %v27, 344
    %v71 = vadd.s32 %v27, 352
    %v72 = vadd.s32 %v27, 360
    %v73 = vadd.s32 %v27, 368
    %v74 = vadd.s32 %v27, 376
    %v75 = vlaneseq
    %v76 = vand.u32 %v75, 127
    %v77 = vmul.u32 %v76, 3
    %vm78 = vcmp.eq.s32.totalorder %v27, %v77
    %vm79 = vcmp.eq.s32.totalorder %v28, %v77
    %vm80 = vcmp.eq.s32.totalorder %v29, %v77
    %vm81 = vcmp.eq.s32.totalorder %v30, %v77
    %vm82 = vcmp.eq.s32.totalorder %v31, %v77
    %vm83 = vcmp.eq.s32.totalorder %v32, %v77
    %vm84 = vcmp.eq.s32.totalorder %v33, %v77
    %vm85 = vcmp.eq.s32.totalorder %v34, %v77
    %vm86 = vcmp.eq.s32.totalorder %v35, %v77
    %vm87 = vcmp.eq.s32.totalorder %v36, %v77
    %vm88 = vcmp.eq.s32.totalorder %v37, %v77
    %vm89 = vcmp.eq.s32.totalorder %v38, %v77
    %vm90 = vcmp.eq.s32.totalorder %v39, %v77
    %vm91 = vcmp.eq.s32.totalorder %v40, %v77
    %vm92 = vcmp.eq.s32.totalorder %v41, %v77
    %vm93 = vcmp.eq.s32.totalorder %v42, %v77
    %vm94 = vcmp.eq.s32.totalorder %v43, %v77
    %vm95 = vcmp.eq.s32.totalorder %v44, %v77
    %vm96 = vcmp.eq.s32.totalorder %v45, %v77
    %vm97 = vcmp.eq.s32.totalorder %v46, %v77
    %vm98 = vcmp.eq.s32.totalorder %v47, %v77
    %vm99 = vcmp.eq.s32.totalorder %v48, %v77
    %vm100 = vcmp.eq.s32.totalorder %v49, %v77
    %vm101 = vcmp.eq.s32.totalorder %v50, %v77
    %vm102 = vcmp.eq.s32.totalorder %v51, %v77
    %vm103 = vcmp.eq.s32.totalorder %v52, %v77
    %vm104 = vcmp.eq.s32.totalorder %v53, %v77
    %vm105 = vcmp.eq.s32.totalorder %v54, %v77
    %vm106 = vcmp.eq.s32.totalorder %v55, %v77
    %vm107 = vcmp.eq.s32.totalorder %v56, %v77
    %vm108 = vcmp.eq.s32.totalorder %v57, %v77
    %vm109 = vcmp.eq.s32.totalorder %v58, %v77
    %vm110 = vcmp.eq.s32.totalorder %v59, %v77
    %vm111 = vcmp.eq.s32.totalorder %v60, %v77
    %vm112 = vcmp.eq.s32.totalorder %v61, %v77
    %vm113 = vcmp.eq.s32.totalorder %v62, %v77
    %vm114 = vcmp.eq.s32.totalorder %v63, %v77
    %vm115 = vcmp.eq.s32.totalorder %v64, %v77
    %vm116 = vcmp.eq.s32.totalorder %v65, %v77
    %vm117 = vcmp.eq.s32.totalorder %v66, %v77
    %vm118 = vcmp.eq.s32.totalorder %v67, %v77
    %vm119 = vcmp.eq.s32.totalorder %v68, %v77
    %vm120 = vcmp.eq.s32.totalorder %v69, %v77
    %vm121 = vcmp.eq.s32.totalorder %v70, %v77
    %vm122 = vcmp.eq.s32.totalorder %v71, %v77
    %vm123 = vcmp.eq.s32.totalorder %v72, %v77
    %vm124 = vcmp.eq.s32.totalorder %v73, %v77
    %vm125 = vcmp.eq.s32.totalorder %v74, %v77
    %v126 = vsel %vm78, 1, 0
    %v127 = vsel %vm79, 1, 0
    %v128 = vsel %vm80, 1, 0
    %v129 = vsel %vm81, 1, 0
    %v130 = vsel %vm82, 1, 0
    %v131 = vsel %vm83, 1, 0
    %v132 = vsel %vm84, 1, 0
    %v133 = vsel %vm85, 1, 0
    %v134 = vsel %vm86, 1, 0
    %v135 = vsel %vm87, 1, 0
    %v136 = vsel %vm88, 1, 0
    %v137 = vsel %vm89, 1, 0
    %v138 = vsel %vm90, 1, 0
    %v139 = vsel %vm91, 1, 0
    %v140 = vsel %vm92, 1, 0
    %v141 = vsel %vm93, 1, 0
    %v142 = vsel %vm94, 1, 0
    %v143 = vsel %vm95, 1, 0
    %v144 = vsel %vm96, 1, 0
    %v145 = vsel %vm97, 1, 0
    %v146 = vsel %vm98, 1, 0
    %v147 = vsel %vm99, 1, 0
    %v148 = vsel %vm100, 1, 0
    %v149 = vsel %vm101, 1, 0
    %v150 = vsel %vm102, 1, 0
    %v151 = vsel %vm103, 1, 0
    %v152 = vsel %vm104, 1, 0
    %v153 = vsel %vm105, 1, 0
    %v154 = vsel %vm106, 1, 0
    %v155 = vsel %vm107, 1, 0
    %v156 = vsel %vm108, 1, 0
    %v157 = vsel %vm109, 1, 0
    %v158 = vsel %vm110, 1, 0
    %v159 = vsel %vm111, 1, 0
    %v160 = vsel %vm112, 1, 0
    %v161 = vsel %vm113, 1, 0
    %v162 = vsel %vm114, 1, 0
    %v163 = vsel %vm115, 1, 0
    %v164 = vsel %vm116, 1, 0
    %v165 = vsel %vm117, 1, 0
    %v166 = vsel %vm118, 1, 0
    %v167 = vsel %vm119, 1, 0
    %v168 = vsel %vm120, 1, 0
    %v169 = vsel %vm121, 1, 0
    %v170 = vsel %vm122, 1, 0
    %v171 = vsel %vm123, 1, 0
    %v172 = vsel %vm124, 1, 0
    %v173 = vsel %vm125, 1, 0
    %v174 = vcvt.s32.f32 %v126
    %v175 = vcvt.s32.f32 %v127
    %v176 = vcvt.s32.f32 %v128
    %v177 = vcvt.s32.f32 %v129
    %v178 = vcvt.s32.f32 %v130
    %v179 = vcvt.s32.f32 %v131
    %v180 = vcvt.s32.f32 %v132
    %v181 = vcvt.s32.f32 %v133
    %v182 = vcvt.s32.f32 %v134
    %v183 = vcvt.s32.f32 %v135
    %v184 = vcvt.s32.f32 %v136
    %v185 = vcvt.s32.f32 %v137
    %v186 = vcvt.s32.f32 %v138
    %v187 = vcvt.s32.f32 %v139
    %v188 = vcvt.s32.f32 %v140
    %v189 = vcvt.s32.f32 %v141
    %v190 = vcvt.s32.f32 %v142
    %v191 = vcvt.s32.f32 %v143
    %v192 = vcvt.s32.f32 %v144
    %v193 = vcvt.s32.f32 %v145
    %v194 = vcvt.s32.f32 %v146
    %v195 = vcvt.s32.f32 %v147
    %v196 = vcvt.s32.f32 %v148
    %v197 = vcvt.s32.f32 %v149
    %v198 = vcvt.s32.f32 %v150
    %v199 = vcvt.s32.f32 %v151
    %v200 = vcvt.s32.f32 %v152
    %v201 = vcvt.s32.f32 %v153
    %v202 = vcvt.s32.f32 %v154
    %v203 = vcvt.s32.f32 %v155
    %v204 = vcvt.s32.f32 %v156
    %v205 = vcvt.s32.f32 %v157
    %v206 = vcvt.s32.f32 %v158
    %v207 = vcvt.s32.f32 %v159
    %v208 = vcvt.s32.f32 %v160
    %v209 = vcvt.s32.f32 %v161
    %v210 = vcvt.s32.f32 %v162
    %v211 = vcvt.s32.f32 %v163
    %v212 = vcvt.s32.f32 %v164
    %v213 = vcvt.s32.f32 %v165
    %v214 = vcvt.s32.f32 %v166
    %v215 = vcvt.s32.f32 %v167
    %v216 = vcvt.s32.f32 %v168
    %v217 = vcvt.s32.f32 %v169
    %v218 = vcvt.s32.f32 %v170
    %v219 = vcvt.s32.f32 %v171
    %v220 = vcvt.s32.f32 %v172
    %v221 = vcvt.s32.f32 %v173
    %v223 = vlaneseq
    %v224 = vshrl.u32 %v223, 7
    %v225 = vsub.s32 0, %v224
    %v226 = vrot.slane %v25, %v225
    %v227 = vlaneseq
    %v228 = vshrl.u32 %v227, 7
    %v229 = vsub.s32 1, %v228
    %v230 = vrot.slane %v25, %v229
    %v231 = vlaneseq
    %v232 = vshrl.u32 %v231, 7
    %v233 = vsub.s32 2, %v232
    %v234 = vrot.slane %v25, %v233
    %238 = vmatprep.subr.mxu0 0.0
    %239 = vmatpush1.msra.mxu0 %v189
    %240 = vmatprep.subr.mxu0 0.0
    %241 = vmatpush1.msra.mxu0 %v188
    %242 = vmatprep.subr.mxu0 0.0
    %243 = vmatpush1.msra.mxu0 %v187
    %244 = vmatprep.subr.mxu0 0.0
    %245 = vmatpush1.msra.mxu0 %v186
    %246 = vmatprep.subr.mxu0 0.0
    %247 = vmatpush1.msra.mxu0 %v185
    %248 = vmatprep.subr.mxu0 0.0
    %249 = vmatpush1.msra.mxu0 %v184
    %250 = vmatprep.subr.mxu0 0.0
    %251 = vmatpush1.msra.mxu0 %v183
    %252 = vmatprep.subr.mxu0 0.0
    %253 = vmatpush1.msra.mxu0 %v182
    %254 = vmatprep.subr.mxu0 0.0
    %255 = vmatpush1.msra.mxu0 %v181
    %256 = vmatprep.subr.mxu0 0.0
    %257 = vmatpush1.msra.mxu0 %v180
    %258 = vmatprep.subr.mxu0 0.0
    %259 = vmatpush1.msra.mxu0 %v179
    %260 = vmatprep.subr.mxu0 0.0
    %261 = vmatpush1.msra.mxu0 %v178
    %262 = vmatprep.subr.mxu0 0.0
    %263 = vmatpush1.msra.mxu0 %v177
    %264 = vmatprep.subr.mxu0 0.0
    %265 = vmatpush1.msra.mxu0 %v176
    %266 = vmatprep.subr.mxu0 0.0
    %267 = vmatpush1.msra.mxu0 %v175
    %268 = vmatprep.subr.mxu0 0.0
    %269 = vmatpush1.msra.mxu0 %v174
    %270 = vmatprep.subr.mxu0 0.0
    %271 = vmatpush2.msra.mxu0 %v205
    %272 = vmatprep.subr.mxu0 0.0
    %273 = vmatpush2.msra.mxu0 %v204
    %274 = vmatprep.subr.mxu0 0.0
    %275 = vmatpush2.msra.mxu0 %v203
    %276 = vmatprep.subr.mxu0 0.0
    %277 = vmatpush2.msra.mxu0 %v202
    %278 = vmatprep.subr.mxu0 0.0
    %279 = vmatpush2.msra.mxu0 %v201
    %280 = vmatprep.subr.mxu0 0.0
    %281 = vmatpush2.msra.mxu0 %v200
    %282 = vmatprep.subr.mxu0 0.0
    %283 = vmatpush2.msra.mxu0 %v199
    %284 = vmatprep.subr.mxu0 0.0
    %285 = vmatpush2.msra.mxu0 %v198
    %286 = vmatprep.subr.mxu0 0.0
    %287 = vmatpush2.msra.mxu0 %v197
    %288 = vmatprep.subr.mxu0 0.0
    %289 = vmatpush2.msra.mxu0 %v196
    %290 = vmatprep.subr.mxu0 0.0
    %291 = vmatpush2.msra.mxu0 %v195
    %292 = vmatprep.subr.mxu0 0.0
    %293 = vmatpush2.msra.mxu0 %v194
    %294 = vmatprep.subr.mxu0 0.0
    %295 = vmatpush2.msra.mxu0 %v193
    %296 = vmatprep.subr.mxu0 0.0
    %297 = vmatpush2.msra.mxu0 %v192
    %298 = vmatprep.subr.mxu0 0.0
    %299 = vmatpush2.msra.mxu0 %v191
    %300 = vmatprep.subr.mxu0 0.0
    %301 = vmatpush2.msra.mxu0 %v190
    %302 = vmatprep.mubr.f32.mxu0 %v230
    %303 = vmatmul.mubr.f32.gmra.mxu0 %v226
    %v304 = vpop.f32.mrf.mxu0
    %v305 = vadd.f32 0.0, %v304
    %v306 = vpop.f32.mrf.mxu0
    %307 = vdwg.mxu0
    %308 = vmatprep.subr.mxu0 0.0
    %309 = vmatpush1.msra.mxu0 %v221
    %310 = vmatprep.subr.mxu0 0.0
    %311 = vmatpush1.msra.mxu0 %v220
    %312 = vmatprep.subr.mxu0 0.0
    %313 = vmatpush1.msra.mxu0 %v219
    %314 = vmatprep.subr.mxu0 0.0
    %315 = vmatpush1.msra.mxu0 %v218
    %316 = vmatprep.subr.mxu0 0.0
    %317 = vmatpush1.msra.mxu0 %v217
    %318 = vmatprep.subr.mxu0 0.0
    %319 = vmatpush1.msra.mxu0 %v216
    %320 = vmatprep.subr.mxu0 0.0
    %321 = vmatpush1.msra.mxu0 %v215
    %322 = vmatprep.subr.mxu0 0.0
    %323 = vmatpush1.msra.mxu0 %v214
    %324 = vmatprep.subr.mxu0 0.0
    %325 = vmatpush1.msra.mxu0 %v213
    %326 = vmatprep.subr.mxu0 0.0
    %327 = vmatpush1.msra.mxu0 %v212
    %328 = vmatprep.subr.mxu0 0.0
    %329 = vmatpush1.msra.mxu0 %v211
    %330 = vmatprep.subr.mxu0 0.0
    %331 = vmatpush1.msra.mxu0 %v210
    %332 = vmatprep.subr.mxu0 0.0
    %333 = vmatpush1.msra.mxu0 %v209
    %334 = vmatprep.subr.mxu0 0.0
    %335 = vmatpush1.msra.mxu0 %v208
    %336 = vmatprep.subr.mxu0 0.0
    %337 = vmatpush1.msra.mxu0 %v207
    %338 = vmatprep.subr.mxu0 0.0
    %339 = vmatpush1.msra.mxu0 %v206
    %340 = vmatprep.subr.mxu0 0.0
    %341 = vmatpush2.msra.mxu0 0.0
    %342 = vmatprep.subr.mxu0 0.0
    %343 = vmatpush2.msra.mxu0 0.0
    %344 = vmatprep.subr.mxu0 0.0
    %345 = vmatpush2.msra.mxu0 0.0
    %346 = vmatprep.subr.mxu0 0.0
    %347 = vmatpush2.msra.mxu0 0.0
    %348 = vmatprep.subr.mxu0 0.0
    %349 = vmatpush2.msra.mxu0 0.0
    %350 = vmatprep.subr.mxu0 0.0
    %351 = vmatpush2.msra.mxu0 0.0
    %352 = vmatprep.subr.mxu0 0.0
    %353 = vmatpush2.msra.mxu0 0.0
    %354 = vmatprep.subr.mxu0 0.0
    %355 = vmatpush2.msra.mxu0 0.0
    %356 = vmatprep.subr.mxu0 0.0
    %357 = vmatpush2.msra.mxu0 0.0
    %358 = vmatprep.subr.mxu0 0.0
    %359 = vmatpush2.msra.mxu0 0.0
    %360 = vmatprep.subr.mxu0 0.0
    %361 = vmatpush2.msra.mxu0 0.0
    %362 = vmatprep.subr.mxu0 0.0
    %363 = vmatpush2.msra.mxu0 0.0
    %364 = vmatprep.subr.mxu0 0.0
    %365 = vmatpush2.msra.mxu0 0.0
    %366 = vmatprep.subr.mxu0 0.0
    %367 = vmatpush2.msra.mxu0 0.0
    %368 = vmatprep.subr.mxu0 0.0
    %369 = vmatpush2.msra.mxu0 0.0
    %370 = vmatprep.subr.mxu0 0.0
    %371 = vmatpush2.msra.mxu0 0.0
    %372 = vmatprep.mubr.f32.mxu0 0.0
    %373 = vmatmul.mubr.f32.gmra.mxu0 %v234
    %v374 = vpop.f32.mrf.mxu0
    %v375 = vadd.f32 %v305, %v374
    %v376 = vpop.f32.mrf.mxu0
    %377 = vdwg.mxu0
    %378 = vst [vmem:[#allocation5] sm:$0x1] %v375
    %v379 = vadd.s32 %v77, 1
    %vm380 = vcmp.eq.s32.totalorder %v27, %v379
    %vm381 = vcmp.eq.s32.totalorder %v28, %v379
    %vm382 = vcmp.eq.s32.totalorder %v29, %v379
    %vm383 = vcmp.eq.s32.totalorder %v30, %v379
    %vm384 = vcmp.eq.s32.totalorder %v31, %v379
    %vm385 = vcmp.eq.s32.totalorder %v32, %v379
    %vm386 = vcmp.eq.s32.totalorder %v33, %v379
    %vm387 = vcmp.eq.s32.totalorder %v34, %v379
    %vm388 = vcmp.eq.s32.totalorder %v35, %v379
    %vm389 = vcmp.eq.s32.totalorder %v36, %v379
    %vm390 = vcmp.eq.s32.totalorder %v37, %v379
    %vm391 = vcmp.eq.s32.totalorder %v38, %v379
    %vm392 = vcmp.eq.s32.totalorder %v39, %v379
    %vm393 = vcmp.eq.s32.totalorder %v40, %v379
    %vm394 = vcmp.eq.s32.totalorder %v41, %v379
    %vm395 = vcmp.eq.s32.totalorder %v42, %v379
    %vm396 = vcmp.eq.s32.totalorder %v43, %v379
    %vm397 = vcmp.eq.s32.totalorder %v44, %v379
    %vm398 = vcmp.eq.s32.totalorder %v45, %v379
    %vm399 = vcmp.eq.s32.totalorder %v46, %v379
    %vm400 = vcmp.eq.s32.totalorder %v47, %v379
    %vm401 = vcmp.eq.s32.totalorder %v48, %v379
    %vm402 = vcmp.eq.s32.totalorder %v49, %v379
    %vm403 = vcmp.eq.s32.totalorder %v50, %v379
    %vm404 = vcmp.eq.s32.totalorder %v51, %v379
    %vm405 = vcmp.eq.s32.totalorder %v52, %v379
    %vm406 = vcmp.eq.s32.totalorder %v53, %v379
    %vm407 = vcmp.eq.s32.totalorder %v54, %v379
    %vm408 = vcmp.eq.s32.totalorder %v55, %v379
    %vm409 = vcmp.eq.s32.totalorder %v56, %v379
    %vm410 = vcmp.eq.s32.totalorder %v57, %v379
    %vm411 = vcmp.eq.s32.totalorder %v58, %v379
    %vm412 = vcmp.eq.s32.totalorder %v59, %v379
    %vm413 = vcmp.eq.s32.totalorder %v60, %v379
    %vm414 = vcmp.eq.s32.totalorder %v61, %v379
    %vm415 = vcmp.eq.s32.totalorder %v62, %v379
    %vm416 = vcmp.eq.s32.totalorder %v63, %v379
    %vm417 = vcmp.eq.s32.totalorder %v64, %v379
    %vm418 = vcmp.eq.s32.totalorder %v65, %v379
    %vm419 = vcmp.eq.s32.totalorder %v66, %v379
    %vm420 = vcmp.eq.s32.totalorder %v67, %v379
    %vm421 = vcmp.eq.s32.totalorder %v68, %v379
    %vm422 = vcmp.eq.s32.totalorder %v69, %v379
    %vm423 = vcmp.eq.s32.totalorder %v70, %v379
    %vm424 = vcmp.eq.s32.totalorder %v71, %v379
    %vm425 = vcmp.eq.s32.totalorder %v72, %v379
    %vm426 = vcmp.eq.s32.totalorder %v73, %v379
    %vm427 = vcmp.eq.s32.totalorder %v74, %v379
    %v428 = vsel %vm380, 1, 0
    %v429 = vsel %vm381, 1, 0
    %v430 = vsel %vm382, 1, 0
    %v431 = vsel %vm383, 1, 0
    %v432 = vsel %vm384, 1, 0
    %v433 = vsel %vm385, 1, 0
    %v434 = vsel %vm386, 1, 0
    %v435 = vsel %vm387, 1, 0
    %v436 = vsel %vm388, 1, 0
    %v437 = vsel %vm389, 1, 0
    %v438 = vsel %vm390, 1, 0
    %v439 = vsel %vm391, 1, 0
    %v440 = vsel %vm392, 1, 0
    %v441 = vsel %vm393, 1, 0
    %v442 = vsel %vm394, 1, 0
    %v443 = vsel %vm395, 1, 0
    %v444 = vsel %vm396, 1, 0
    %v445 = vsel %vm397, 1, 0
    %v446 = vsel %vm398, 1, 0
    %v447 = vsel %vm399, 1, 0
    %v448 = vsel %vm400, 1, 0
    %v449 = vsel %vm401, 1, 0
    %v450 = vsel %vm402, 1, 0
    %v451 = vsel %vm403, 1, 0
    %v452 = vsel %vm404, 1, 0
    %v453 = vsel %vm405, 1, 0
    %v454 = vsel %vm406, 1, 0
    %v455 = vsel %vm407, 1, 0
    %v456 = vsel %vm408, 1, 0
    %v457 = vsel %vm409, 1, 0
    %v458 = vsel %vm410, 1, 0
    %v459 = vsel %vm411, 1, 0
    %v460 = vsel %vm412, 1, 0
    %v461 = vsel %vm413, 1, 0
    %v462 = vsel %vm414, 1, 0
    %v463 = vsel %vm415, 1, 0
    %v464 = vsel %vm416, 1, 0
    %v465 = vsel %vm417, 1, 0
    %v466 = vsel %vm418, 1, 0
    %v467 = vsel %vm419, 1, 0
    %v468 = vsel %vm420, 1, 0
    %v469 = vsel %vm421, 1, 0
    %v470 = vsel %vm422, 1, 0
    %v471 = vsel %vm423, 1, 0
    %v472 = vsel %vm424, 1, 0
    %v473 = vsel %vm425, 1, 0
    %v474 = vsel %vm426, 1, 0
    %v475 = vsel %vm427, 1, 0
    %v476 = vcvt.s32.f32 %v428
    %v477 = vcvt.s32.f32 %v429
    %v478 = vcvt.s32.f32 %v430
    %v479 = vcvt.s32.f32 %v431
    %v480 = vcvt.s32.f32 %v432
    %v481 = vcvt.s32.f32 %v433
    %v482 = vcvt.s32.f32 %v434
    %v483 = vcvt.s32.f32 %v435
    %v484 = vcvt.s32.f32 %v436
    %v485 = vcvt.s32.f32 %v437
    %v486 = vcvt.s32.f32 %v438
    %v487 = vcvt.s32.f32 %v439
    %v488 = vcvt.s32.f32 %v440
    %v489 = vcvt.s32.f32 %v441
    %v490 = vcvt.s32.f32 %v442
    %v491 = vcvt.s32.f32 %v443
    %v492 = vcvt.s32.f32 %v444
    %v493 = vcvt.s32.f32 %v445
    %v494 = vcvt.s32.f32 %v446
    %v495 = vcvt.s32.f32 %v447
    %v496 = vcvt.s32.f32 %v448
    %v497 = vcvt.s32.f32 %v449
    %v498 = vcvt.s32.f32 %v450
    %v499 = vcvt.s32.f32 %v451
    %v500 = vcvt.s32.f32 %v452
    %v501 = vcvt.s32.f32 %v453
    %v502 = vcvt.s32.f32 %v454
    %v503 = vcvt.s32.f32 %v455
    %v504 = vcvt.s32.f32 %v456
    %v505 = vcvt.s32.f32 %v457
    %v506 = vcvt.s32.f32 %v458
    %v507 = vcvt.s32.f32 %v459
    %v508 = vcvt.s32.f32 %v460
    %v509 = vcvt.s32.f32 %v461
    %v510 = vcvt.s32.f32 %v462
    %v511 = vcvt.s32.f32 %v463
    %v512 = vcvt.s32.f32 %v464
    %v513 = vcvt.s32.f32 %v465
    %v514 = vcvt.s32.f32 %v466
    %v515 = vcvt.s32.f32 %v467
    %v516 = vcvt.s32.f32 %v468
    %v517 = vcvt.s32.f32 %v469
    %v518 = vcvt.s32.f32 %v470
    %v519 = vcvt.s32.f32 %v471
    %v520 = vcvt.s32.f32 %v472
    %v521 = vcvt.s32.f32 %v473
    %v522 = vcvt.s32.f32 %v474
    %v523 = vcvt.s32.f32 %v475
    %524 = vmatprep.subr.mxu0 0.0
    %525 = vmatpush1.msra.mxu0 %v491
    %526 = vmatprep.subr.mxu0 0.0
    %527 = vmatpush1.msra.mxu0 %v490
    %528 = vmatprep.subr.mxu0 0.0
    %529 = vmatpush1.msra.mxu0 %v489
    %530 = vmatprep.subr.mxu0 0.0
    %531 = vmatpush1.msra.mxu0 %v488
    %532 = vmatprep.subr.mxu0 0.0
    %533 = vmatpush1.msra.mxu0 %v487
    %534 = vmatprep.subr.mxu0 0.0
    %535 = vmatpush1.msra.mxu0 %v486
    %536 = vmatprep.subr.mxu0 0.0
    %537 = vmatpush1.msra.mxu0 %v485
    %538 = vmatprep.subr.mxu0 0.0
    %539 = vmatpush1.msra.mxu0 %v484
    %540 = vmatprep.subr.mxu0 0.0
    %541 = vmatpush1.msra.mxu0 %v483
    %542 = vmatprep.subr.mxu0 0.0
    %543 = vmatpush1.msra.mxu0 %v482
    %544 = vmatprep.subr.mxu0 0.0
    %545 = vmatpush1.msra.mxu0 %v481
    %546 = vmatprep.subr.mxu0 0.0
    %547 = vmatpush1.msra.mxu0 %v480
    %548 = vmatprep.subr.mxu0 0.0
    %549 = vmatpush1.msra.mxu0 %v479
    %550 = vmatprep.subr.mxu0 0.0
    %551 = vmatpush1.msra.mxu0 %v478
    %552 = vmatprep.subr.mxu0 0.0
    %553 = vmatpush1.msra.mxu0 %v477
    %554 = vmatprep.subr.mxu0 0.0
    %555 = vmatpush1.msra.mxu0 %v476
    %556 = vmatprep.subr.mxu0 0.0
    %557 = vmatpush2.msra.mxu0 %v507
    %558 = vmatprep.subr.mxu0 0.0
    %559 = vmatpush2.msra.mxu0 %v506
    %560 = vmatprep.subr.mxu0 0.0
    %561 = vmatpush2.msra.mxu0 %v505
    %562 = vmatprep.subr.mxu0 0.0
    %563 = vmatpush2.msra.mxu0 %v504
    %564 = vmatprep.subr.mxu0 0.0
    %565 = vmatpush2.msra.mxu0 %v503
    %566 = vmatprep.subr.mxu0 0.0
    %567 = vmatpush2.msra.mxu0 %v502
    %568 = vmatprep.subr.mxu0 0.0
    %569 = vmatpush2.msra.mxu0 %v501
    %570 = vmatprep.subr.mxu0 0.0
    %571 = vmatpush2.msra.mxu0 %v500
    %572 = vmatprep.subr.mxu0 0.0
    %573 = vmatpush2.msra.mxu0 %v499
    %574 = vmatprep.subr.mxu0 0.0
    %575 = vmatpush2.msra.mxu0 %v498
    %576 = vmatprep.subr.mxu0 0.0
    %577 = vmatpush2.msra.mxu0 %v497
    %578 = vmatprep.subr.mxu0 0.0
    %579 = vmatpush2.msra.mxu0 %v496
    %580 = vmatprep.subr.mxu0 0.0
    %581 = vmatpush2.msra.mxu0 %v495
    %582 = vmatprep.subr.mxu0 0.0
    %583 = vmatpush2.msra.mxu0 %v494
    %584 = vmatprep.subr.mxu0 0.0
    %585 = vmatpush2.msra.mxu0 %v493
    %586 = vmatprep.subr.mxu0 0.0
    %587 = vmatpush2.msra.mxu0 %v492
    %588 = vmatprep.mubr.f32.mxu0 %v230
    %589 = vmatmul.mubr.f32.gmra.mxu0 %v226
    %v590 = vpop.f32.mrf.mxu0
    %v591 = vadd.f32 0.0, %v590
    %v592 = vpop.f32.mrf.mxu0
    %593 = vdwg.mxu0
    %594 = vmatprep.subr.mxu0 0.0
    %595 = vmatpush1.msra.mxu0 %v523
    %596 = vmatprep.subr.mxu0 0.0
    %597 = vmatpush1.msra.mxu0 %v522
    %598 = vmatprep.subr.mxu0 0.0
    %599 = vmatpush1.msra.mxu0 %v521
    %600 = vmatprep.subr.mxu0 0.0
    %601 = vmatpush1.msra.mxu0 %v520
    %602 = vmatprep.subr.mxu0 0.0
    %603 = vmatpush1.msra.mxu0 %v519
    %604 = vmatprep.subr.mxu0 0.0
    %605 = vmatpush1.msra.mxu0 %v518
    %606 = vmatprep.subr.mxu0 0.0
    %607 = vmatpush1.msra.mxu0 %v517
    %608 = vmatprep.subr.mxu0 0.0
    %609 = vmatpush1.msra.mxu0 %v516
    %610 = vmatprep.subr.mxu0 0.0
    %611 = vmatpush1.msra.mxu0 %v515
    %612 = vmatprep.subr.mxu0 0.0
    %613 = vmatpush1.msra.mxu0 %v514
    %614 = vmatprep.subr.mxu0 0.0
    %615 = vmatpush1.msra.mxu0 %v513
    %616 = vmatprep.subr.mxu0 0.0
    %617 = vmatpush1.msra.mxu0 %v512
    %618 = vmatprep.subr.mxu0 0.0
    %619 = vmatpush1.msra.mxu0 %v511
    %620 = vmatprep.subr.mxu0 0.0
    %621 = vmatpush1.msra.mxu0 %v510
    %622 = vmatprep.subr.mxu0 0.0
    %623 = vmatpush1.msra.mxu0 %v509
    %624 = vmatprep.subr.mxu0 0.0
    %625 = vmatpush1.msra.mxu0 %v508
    %626 = vmatprep.subr.mxu0 0.0
    %627 = vmatpush2.msra.mxu0 0.0
    %628 = vmatprep.subr.mxu0 0.0
    %629 = vmatpush2.msra.mxu0 0.0
    %630 = vmatprep.subr.mxu0 0.0
    %631 = vmatpush2.msra.mxu0 0.0
    %632 = vmatprep.subr.mxu0 0.0
    %633 = vmatpush2.msra.mxu0 0.0
    %634 = vmatprep.subr.mxu0 0.0
    %635 = vmatpush2.msra.mxu0 0.0
    %636 = vmatprep.subr.mxu0 0.0
    %637 = vmatpush2.msra.mxu0 0.0
    %638 = vmatprep.subr.mxu0 0.0
    %639 = vmatpush2.msra.mxu0 0.0
    %640 = vmatprep.subr.mxu0 0.0
    %641 = vmatpush2.msra.mxu0 0.0
    %642 = vmatprep.subr.mxu0 0.0
    %643 = vmatpush2.msra.mxu0 0.0
    %644 = vmatprep.subr.mxu0 0.0
    %645 = vmatpush2.msra.mxu0 0.0
    %646 = vmatprep.subr.mxu0 0.0
    %647 = vmatpush2.msra.mxu0 0.0
    %648 = vmatprep.subr.mxu0 0.0
    %649 = vmatpush2.msra.mxu0 0.0
    %650 = vmatprep.subr.mxu0 0.0
    %651 = vmatpush2.msra.mxu0 0.0
    %652 = vmatprep.subr.mxu0 0.0
    %653 = vmatpush2.msra.mxu0 0.0
    %654 = vmatprep.subr.mxu0 0.0
    %655 = vmatpush2.msra.mxu0 0.0
    %656 = vmatprep.subr.mxu0 0.0
    %657 = vmatpush2.msra.mxu0 0.0
    %658 = vmatprep.mubr.f32.mxu0 0.0
    %659 = vmatmul.mubr.f32.gmra.mxu0 %v234
    %v660 = vpop.f32.mrf.mxu0
    %v661 = vadd.f32 %v591, %v660
    %v662 = vpop.f32.mrf.mxu0
    %663 = vdwg.mxu0
    %664 = vst [vmem:[#allocation6] sm:$0x1] %v661
    %v665 = vadd.s32 %v77, 2
    %vm666 = vcmp.eq.s32.totalorder %v27, %v665
    %vm667 = vcmp.eq.s32.totalorder %v28, %v665
    %vm668 = vcmp.eq.s32.totalorder %v29, %v665
    %vm669 = vcmp.eq.s32.totalorder %v30, %v665
    %vm670 = vcmp.eq.s32.totalorder %v31, %v665
    %vm671 = vcmp.eq.s32.totalorder %v32, %v665
    %vm672 = vcmp.eq.s32.totalorder %v33, %v665
    %vm673 = vcmp.eq.s32.totalorder %v34, %v665
    %vm674 = vcmp.eq.s32.totalorder %v35, %v665
    %vm675 = vcmp.eq.s32.totalorder %v36, %v665
    %vm676 = vcmp.eq.s32.totalorder %v37, %v665
    %vm677 = vcmp.eq.s32.totalorder %v38, %v665
    %vm678 = vcmp.eq.s32.totalorder %v39, %v665
    %vm679 = vcmp.eq.s32.totalorder %v40, %v665
    %vm680 = vcmp.eq.s32.totalorder %v41, %v665
    %vm681 = vcmp.eq.s32.totalorder %v42, %v665
    %vm682 = vcmp.eq.s32.totalorder %v43, %v665
    %vm683 = vcmp.eq.s32.totalorder %v44, %v665
    %vm684 = vcmp.eq.s32.totalorder %v45, %v665
    %vm685 = vcmp.eq.s32.totalorder %v46, %v665
    %vm686 = vcmp.eq.s32.totalorder %v47, %v665
    %vm687 = vcmp.eq.s32.totalorder %v48, %v665
    %vm688 = vcmp.eq.s32.totalorder %v49, %v665
    %vm689 = vcmp.eq.s32.totalorder %v50, %v665
    %vm690 = vcmp.eq.s32.totalorder %v51, %v665
    %vm691 = vcmp.eq.s32.totalorder %v52, %v665
    %vm692 = vcmp.eq.s32.totalorder %v53, %v665
    %vm693 = vcmp.eq.s32.totalorder %v54, %v665
    %vm694 = vcmp.eq.s32.totalorder %v55, %v665
    %vm695 = vcmp.eq.s32.totalorder %v56, %v665
    %vm696 = vcmp.eq.s32.totalorder %v57, %v665
    %vm697 = vcmp.eq.s32.totalorder %v58, %v665
    %vm698 = vcmp.eq.s32.totalorder %v59, %v665
    %vm699 = vcmp.eq.s32.totalorder %v60, %v665
    %vm700 = vcmp.eq.s32.totalorder %v61, %v665
    %vm701 = vcmp.eq.s32.totalorder %v62, %v665
    %vm702 = vcmp.eq.s32.totalorder %v63, %v665
    %vm703 = vcmp.eq.s32.totalorder %v64, %v665
    %vm704 = vcmp.eq.s32.totalorder %v65, %v665
    %vm705 = vcmp.eq.s32.totalorder %v66, %v665
    %vm706 = vcmp.eq.s32.totalorder %v67, %v665
    %vm707 = vcmp.eq.s32.totalorder %v68, %v665
    %vm708 = vcmp.eq.s32.totalorder %v69, %v665
    %vm709 = vcmp.eq.s32.totalorder %v70, %v665
    %vm710 = vcmp.eq.s32.totalorder %v71, %v665
    %vm711 = vcmp.eq.s32.totalorder %v72, %v665
    %vm712 = vcmp.eq.s32.totalorder %v73, %v665
    %vm713 = vcmp.eq.s32.totalorder %v74, %v665
    %v714 = vsel %vm666, 1, 0
    %v715 = vsel %vm667, 1, 0
    %v716 = vsel %vm668, 1, 0
    %v717 = vsel %vm669, 1, 0
    %v718 = vsel %vm670, 1, 0
    %v719 = vsel %vm671, 1, 0
    %v720 = vsel %vm672, 1, 0
    %v721 = vsel %vm673, 1, 0
    %v722 = vsel %vm674, 1, 0
    %v723 = vsel %vm675, 1, 0
    %v724 = vsel %vm676, 1, 0
    %v725 = vsel %vm677, 1, 0
    %v726 = vsel %vm678, 1, 0
    %v727 = vsel %vm679, 1, 0
    %v728 = vsel %vm680, 1, 0
    %v729 = vsel %vm681, 1, 0
    %v730 = vsel %vm682, 1, 0
    %v731 = vsel %vm683, 1, 0
    %v732 = vsel %vm684, 1, 0
    %v733 = vsel %vm685, 1, 0
    %v734 = vsel %vm686, 1, 0
    %v735 = vsel %vm687, 1, 0
    %v736 = vsel %vm688, 1, 0
    %v737 = vsel %vm689, 1, 0
    %v738 = vsel %vm690, 1, 0
    %v739 = vsel %vm691, 1, 0
    %v740 = vsel %vm692, 1, 0
    %v741 = vsel %vm693, 1, 0
    %v742 = vsel %vm694, 1, 0
    %v743 = vsel %vm695, 1, 0
    %v744 = vsel %vm696, 1, 0
    %v745 = vsel %vm697, 1, 0
    %v746 = vsel %vm698, 1, 0
    %v747 = vsel %vm699, 1, 0
    %v748 = vsel %vm700, 1, 0
    %v749 = vsel %vm701, 1, 0
    %v750 = vsel %vm702, 1, 0
    %v751 = vsel %vm703, 1, 0
    %v752 = vsel %vm704, 1, 0
    %v753 = vsel %vm705, 1, 0
    %v754 = vsel %vm706, 1, 0
    %v755 = vsel %vm707, 1, 0
    %v756 = vsel %vm708, 1, 0
    %v757 = vsel %vm709, 1, 0
    %v758 = vsel %vm710, 1, 0
    %v759 = vsel %vm711, 1, 0
    %v760 = vsel %vm712, 1, 0
    %v761 = vsel %vm713, 1, 0
    %v762 = vcvt.s32.f32 %v714
    %v763 = vcvt.s32.f32 %v715
    %v764 = vcvt.s32.f32 %v716
    %v765 = vcvt.s32.f32 %v717
    %v766 = vcvt.s32.f32 %v718
    %v767 = vcvt.s32.f32 %v719
    %v768 = vcvt.s32.f32 %v720
    %v769 = vcvt.s32.f32 %v721
    %v770 = vcvt.s32.f32 %v722
    %v771 = vcvt.s32.f32 %v723
    %v772 = vcvt.s32.f32 %v724
    %v773 = vcvt.s32.f32 %v725
    %v774 = vcvt.s32.f32 %v726
    %v775 = vcvt.s32.f32 %v727
    %v776 = vcvt.s32.f32 %v728
    %v777 = vcvt.s32.f32 %v729
    %v778 = vcvt.s32.f32 %v730
    %v779 = vcvt.s32.f32 %v731
    %v780 = vcvt.s32.f32 %v732
    %v781 = vcvt.s32.f32 %v733
    %v782 = vcvt.s32.f32 %v734
    %v783 = vcvt.s32.f32 %v735
    %v784 = vcvt.s32.f32 %v736
    %v785 = vcvt.s32.f32 %v737
    %v786 = vcvt.s32.f32 %v738
    %v787 = vcvt.s32.f32 %v739
    %v788 = vcvt.s32.f32 %v740
    %v789 = vcvt.s32.f32 %v741
    %v790 = vcvt.s32.f32 %v742
    %v791 = vcvt.s32.f32 %v743
    %v792 = vcvt.s32.f32 %v744
    %v793 = vcvt.s32.f32 %v745
    %v794 = vcvt.s32.f32 %v746
    %v795 = vcvt.s32.f32 %v747
    %v796 = vcvt.s32.f32 %v748
    %v797 = vcvt.s32.f32 %v749
    %v798 = vcvt.s32.f32 %v750
    %v799 = vcvt.s32.f32 %v751
    %v800 = vcvt.s32.f32 %v752
    %v801 = vcvt.s32.f32 %v753
    %v802 = vcvt.s32.f32 %v754
    %v803 = vcvt.s32.f32 %v755
    %v804 = vcvt.s32.f32 %v756
    %v805 = vcvt.s32.f32 %v757
    %v806 = vcvt.s32.f32 %v758
    %v807 = vcvt.s32.f32 %v759
    %v808 = vcvt.s32.f32 %v760
    %v809 = vcvt.s32.f32 %v761
    %810 = vmatprep.subr.mxu0 0.0
    %811 = vmatpush1.msra.mxu0 %v777
    %812 = vmatprep.subr.mxu0 0.0
    %813 = vmatpush1.msra.mxu0 %v776
    %814 = vmatprep.subr.mxu0 0.0
    %815 = vmatpush1.msra.mxu0 %v775
    %816 = vmatprep.subr.mxu0 0.0
    %817 = vmatpush1.msra.mxu0 %v774
    %818 = vmatprep.subr.mxu0 0.0
    %819 = vmatpush1.msra.mxu0 %v773
    %820 = vmatprep.subr.mxu0 0.0
    %821 = vmatpush1.msra.mxu0 %v772
    %822 = vmatprep.subr.mxu0 0.0
    %823 = vmatpush1.msra.mxu0 %v771
    %824 = vmatprep.subr.mxu0 0.0
    %825 = vmatpush1.msra.mxu0 %v770
    %826 = vmatprep.subr.mxu0 0.0
    %827 = vmatpush1.msra.mxu0 %v769
    %828 = vmatprep.subr.mxu0 0.0
    %829 = vmatpush1.msra.mxu0 %v768
    %830 = vmatprep.subr.mxu0 0.0
    %831 = vmatpush1.msra.mxu0 %v767
    %832 = vmatprep.subr.mxu0 0.0
    %833 = vmatpush1.msra.mxu0 %v766
    %834 = vmatprep.subr.mxu0 0.0
    %835 = vmatpush1.msra.mxu0 %v765
    %836 = vmatprep.subr.mxu0 0.0
    %837 = vmatpush1.msra.mxu0 %v764
    %838 = vmatprep.subr.mxu0 0.0
    %839 = vmatpush1.msra.mxu0 %v763
    %840 = vmatprep.subr.mxu0 0.0
    %841 = vmatpush1.msra.mxu0 %v762
    %842 = vmatprep.subr.mxu0 0.0
    %843 = vmatpush2.msra.mxu0 %v793
    %844 = vmatprep.subr.mxu0 0.0
    %845 = vmatpush2.msra.mxu0 %v792
    %846 = vmatprep.subr.mxu0 0.0
    %847 = vmatpush2.msra.mxu0 %v791
    %848 = vmatprep.subr.mxu0 0.0
    %849 = vmatpush2.msra.mxu0 %v790
    %850 = vmatprep.subr.mxu0 0.0
    %851 = vmatpush2.msra.mxu0 %v789
    %852 = vmatprep.subr.mxu0 0.0
    %853 = vmatpush2.msra.mxu0 %v788
    %854 = vmatprep.subr.mxu0 0.0
    %855 = vmatpush2.msra.mxu0 %v787
    %856 = vmatprep.subr.mxu0 0.0
    %857 = vmatpush2.msra.mxu0 %v786
    %858 = vmatprep.subr.mxu0 0.0
    %859 = vmatpush2.msra.mxu0 %v785
    %860 = vmatprep.subr.mxu0 0.0
    %861 = vmatpush2.msra.mxu0 %v784
    %862 = vmatprep.subr.mxu0 0.0
    %863 = vmatpush2.msra.mxu0 %v783
    %864 = vmatprep.subr.mxu0 0.0
    %865 = vmatpush2.msra.mxu0 %v782
    %866 = vmatprep.subr.mxu0 0.0
    %867 = vmatpush2.msra.mxu0 %v781
    %868 = vmatprep.subr.mxu0 0.0
    %869 = vmatpush2.msra.mxu0 %v780
    %870 = vmatprep.subr.mxu0 0.0
    %871 = vmatpush2.msra.mxu0 %v779
    %872 = vmatprep.subr.mxu0 0.0
    %873 = vmatpush2.msra.mxu0 %v778
    %874 = vmatprep.mubr.f32.mxu0 %v230
    %875 = vmatmul.mubr.f32.gmra.mxu0 %v226
    %v876 = vpop.f32.mrf.mxu0
    %v877 = vadd.f32 0.0, %v876
    %v878 = vpop.f32.mrf.mxu0
    %879 = vdwg.mxu0
    %880 = vmatprep.subr.mxu0 0.0
    %881 = vmatpush1.msra.mxu0 %v809
    %882 = vmatprep.subr.mxu0 0.0
    %883 = vmatpush1.msra.mxu0 %v808
    %884 = vmatprep.subr.mxu0 0.0
    %885 = vmatpush1.msra.mxu0 %v807
    %886 = vmatprep.subr.mxu0 0.0
    %887 = vmatpush1.msra.mxu0 %v806
    %888 = vmatprep.subr.mxu0 0.0
    %889 = vmatpush1.msra.mxu0 %v805
    %890 = vmatprep.subr.mxu0 0.0
    %891 = vmatpush1.msra.mxu0 %v804
    %892 = vmatprep.subr.mxu0 0.0
    %893 = vmatpush1.msra.mxu0 %v803
    %894 = vmatprep.subr.mxu0 0.0
    %895 = vmatpush1.msra.mxu0 %v802
    %896 = vmatprep.subr.mxu0 0.0
    %897 = vmatpush1.msra.mxu0 %v801
    %898 = vmatprep.subr.mxu0 0.0
    %899 = vmatpush1.msra.mxu0 %v800
    %900 = vmatprep.subr.mxu0 0.0
    %901 = vmatpush1.msra.mxu0 %v799
    %902 = vmatprep.subr.mxu0 0.0
    %903 = vmatpush1.msra.mxu0 %v798
    %904 = vmatprep.subr.mxu0 0.0
    %905 = vmatpush1.msra.mxu0 %v797
    %906 = vmatprep.subr.mxu0 0.0
    %907 = vmatpush1.msra.mxu0 %v796
    %908 = vmatprep.subr.mxu0 0.0
    %909 = vmatpush1.msra.mxu0 %v795
    %910 = vmatprep.subr.mxu0 0.0
    %911 = vmatpush1.msra.mxu0 %v794
    %912 = vmatprep.subr.mxu0 0.0
    %913 = vmatpush2.msra.mxu0 0.0
    %914 = vmatprep.subr.mxu0 0.0
    %915 = vmatpush2.msra.mxu0 0.0
    %916 = vmatprep.subr.mxu0 0.0
    %917 = vmatpush2.msra.mxu0 0.0
    %918 = vmatprep.subr.mxu0 0.0
    %919 = vmatpush2.msra.mxu0 0.0
    %920 = vmatprep.subr.mxu0 0.0
    %921 = vmatpush2.msra.mxu0 0.0
    %922 = vmatprep.subr.mxu0 0.0
    %923 = vmatpush2.msra.mxu0 0.0
    %924 = vmatprep.subr.mxu0 0.0
    %925 = vmatpush2.msra.mxu0 0.0
    %926 = vmatprep.subr.mxu0 0.0
    %927 = vmatpush2.msra.mxu0 0.0
    %928 = vmatprep.subr.mxu0 0.0
    %929 = vmatpush2.msra.mxu0 0.0
    %930 = vmatprep.subr.mxu0 0.0
    %931 = vmatpush2.msra.mxu0 0.0
    %932 = vmatprep.subr.mxu0 0.0
    %933 = vmatpush2.msra.mxu0 0.0
    %934 = vmatprep.subr.mxu0 0.0
    %935 = vmatpush2.msra.mxu0 0.0
    %936 = vmatprep.subr.mxu0 0.0
    %937 = vmatpush2.msra.mxu0 0.0
    %938 = vmatprep.subr.mxu0 0.0
    %939 = vmatpush2.msra.mxu0 0.0
    %940 = vmatprep.subr.mxu0 0.0
    %941 = vmatpush2.msra.mxu0 0.0
    %942 = vmatprep.subr.mxu0 0.0
    %943 = vmatpush2.msra.mxu0 0.0
    %944 = vmatprep.mubr.f32.mxu0 0.0
    %945 = vmatmul.mubr.f32.gmra.mxu0 %v234
    %v946 = vpop.f32.mrf.mxu0
    %v947 = vadd.f32 %v877, %v946
    %v948 = vpop.f32.mrf.mxu0
    %949 = vdwg.mxu0
    %950 = vst [vmem:[#allocation8] sm:$0x1] %v947
    // Predicated region
    $region10: #{tpu_custom_call.1} parent=1 // pred_check
      _
    $region11: #{tpu_custom_call.1} parent=1 // pred_check_branch
      %952 = sbr.rel (0) target = $region13
    $region12: #{tpu_custom_call.1} parent=1 // pred_region
      %s954 = ssub.s32 16, 16
      %955 = vsyncadd [#allocation4], %s954
      %s957 = sshll.u32 [#allocation5], 4
      %s958 = int_to_ptr.vmem [resolvable:$true] %s957
      %960 = dma.vmem_to_hbm [thread:$0]  %s958, 16, %s1, [#allocation4]
    $region13: #{tpu_custom_call.1} parent=1 // pred_fallthru
      _
    // Predicated region
    $region14: #{tpu_custom_call.1} parent=1 // pred_check
      _
    $region15: #{tpu_custom_call.1} parent=1 // pred_check_branch
      %962 = sbr.rel (0) target = $region17
    $region16: #{tpu_custom_call.1} parent=1 // pred_region
      %s964 = ssub.s32 16, 16
      %965 = vsyncadd [#allocation7], %s964
      %s967 = sshll.u32 [#allocation6], 4
      %s968 = int_to_ptr.vmem [resolvable:$true] %s967
      %970 = dma.vmem_to_hbm [thread:$0]  %s968, 16, %s2, [#allocation7]
    $region17: #{tpu_custom_call.1} parent=1 // pred_fallthru
      _
    // Predicated region
    $region18: #{tpu_custom_call.1} parent=1 // pred_check
      _
    $region19: #{tpu_custom_call.1} parent=1 // pred_check_branch
      %972 = sbr.rel (0) target = $region21
    $region20: #{tpu_custom_call.1} parent=1 // pred_region
      %s974 = ssub.s32 16, 16
      %975 = vsyncadd [#allocation7], %s974
      %s977 = sshll.u32 [#allocation8], 4
      %s978 = int_to_ptr.vmem [resolvable:$true] %s977
      %980 = dma.vmem_to_hbm [thread:$0]  %s978, 16, %s3, [#allocation7]
    $region21: #{tpu_custom_call.1} parent=1 // pred_fallthru
      _
    // Predicated region
    $region22: #{tpu_custom_call.1} parent=1 // pred_check
      _
    $region23: #{tpu_custom_call.1} parent=1 // pred_check_branch
      %982 = sbr.rel (0) target = $region25
    $region24: #{tpu_custom_call.1} parent=1 // pred_region
      %983 = dma.done [#allocation4], 16
    $region25: #{tpu_custom_call.1} parent=1 // pred_fallthru
      _
    // Predicated region
    $region26: #{tpu_custom_call.1} parent=1 // pred_check
      _
    $region27: #{tpu_custom_call.1} parent=1 // pred_check_branch
      %985 = sbr.rel (0) target = $region29
    $region28: #{tpu_custom_call.1} parent=1 // pred_region
      %986 = dma.done [#allocation7], 16
    $region29: #{tpu_custom_call.1} parent=1 // pred_fallthru
      _
    // Predicated region
    $region30: #{tpu_custom_call.1} parent=1 // pred_check
      _
    $region31: #{tpu_custom_call.1} parent=1 // pred_check_branch
      %988 = sbr.rel (0) target = $region33
    $region32: #{tpu_custom_call.1} parent=1 // pred_region
      %989 = dma.done [#allocation7], 16
    $region33: #{tpu_custom_call.1} parent=1 // pred_fallthru
      _
    %990 = vsyncpa [#allocation3], 1
    %991 = vsyncpa [#allocation4], 1
    %992 = vsyncpa [#allocation7], 1

</llo_original>
